<compile_context>
chip_gen: v7x
topology: tpu7x:2x2x1
jax: 0.10.0
libtpu: 0.0.40
codegen_flags: <defaults>
</compile_context>

<pallas_src>
import functools

import jax
import jax.numpy as jnp
from jax.experimental import pallas as pl
from jax.experimental.pallas import tpu as pltpu


_LANE = 128
_TILE_BUDGET_BYTES = 24 << 20   # double-buffered tile footprint target
_VMEM_LIMIT_CAP = 48 << 20      # safe on v5e/v6e/v7x (v7x physical = 64 MiB)


# ---------------------------------------------------------------------------
# Kernels
# ---------------------------------------------------------------------------
def _linear_kernel(x_ref, w_ref, o_ref):
    """Collapsed-K: one (tm, tn) output tile from a single MXU dot.

    x_ref: (tm, Dp)   activation tile
    w_ref: (Dp, tn)   pre-transposed weight tile (contraction on dim 0 of RHS)
    o_ref: (tm, tn)   output tile (lane-dense along tn)
    """
    o_ref[...] = jnp.dot(
        x_ref[...], w_ref[...], preferred_element_type=jnp.float32
    ).astype(o_ref.dtype)


def _linear_acc_kernel(x_ref, w_ref, o_ref, acc_ref):
    """Tiled-K fallback: f32 accumulator over the K grid axis."""
    k = pl.program_id(2)

    @pl.when(k == 0)
    def _init():
        acc_ref[...] = jnp.zeros_like(acc_ref)

    acc_ref[...] += jnp.dot(
        x_ref[...], w_ref[...], preferred_element_type=jnp.float32
    )

    @pl.when(k == pl.num_programs(2) - 1)
    def _writeback():
        o_ref[...] = acc_ref[...].astype(o_ref.dtype)


# ---------------------------------------------------------------------------
# Helpers
# ---------------------------------------------------------------------------
def _round_up(n, m):
    return ((n + m - 1) // m) * m


def _pad_axis(a, axis, multiple):
    rem = (-a.shape[axis]) % multiple
    if rem == 0:
        return a
    pads = [(0, 0)] * a.ndim
    pads[axis] = (0, rem)
    return jnp.pad(a, pads)


def _sublane_multiple(dtype):
    # 8 rows / sublane-tile for 32-bit, 16 for 16-bit, 32 for 8-bit dtypes.
    bits = jnp.dtype(dtype).itemsize * 8
    return max(8, 256 // bits)


def _select_tiles(B, Dp, Pp, itemsize, sub):
    """Return (tm, tn, tk, collapsed_k). All static Python ints."""
    Bp = _round_up(B, sub)

    # Full-batch tm (weight streamed from HBM exactly once), capped so the
    # activation tile alone stays modest.
    tm = Bp
    max_x_tile_bytes = 8 << 20
    if tm * Dp * itemsize > max_x_tile_bytes:
        tm = max(sub, (max_x_tile_bytes // (Dp * itemsize)) // sub * sub)

    # Pp is padded to a multiple of 512 when P > 512 (see prepare), so the
    # candidates below always divide Pp.
    tn_cands = [Pp] if Pp <= 512 else [512, 256, 128]

    def fits(tm_, tn_, tk_, acc):
        f = 2 * (tm_ * tk_ + tk_ * tn_ + tm_ * tn_) * itemsize
        if acc:
            f += tm_ * tn_ * 4
        return f <= _TILE_BUDGET_BYTES

    # Preferred: collapse K entirely (no accumulator, no K grid loop).
    for tn in tn_cands:
        if fits(tm, tn, Dp, acc=False):
            return tm, tn, Dp, True

    # Fallback: tiled K with an f32 accumulator.
    tn = tn_cands[-1]
    for tk in (2048, 1024, 512, 256, 128):
        if tk <= Dp and Dp % tk == 0 and fits(tm, tn, tk, acc=True):
            return tm, tn, tk, False

    # Last resort: shrink tm too.
    tk = 128
    while not fits(tm, tn, tk, acc=True) and tm > sub:
        tm = max(sub, (tm // 2) // sub * sub)
    return tm, tn, tk, False


def _maybe_split_for_megacore(tm, tn, Bp, Pp, weight_bytes, sub):
    """Keep >= 2 grid blocks on a parallel axis for v7x's two TensorCores,
    but only when the problem is big enough that the split is worth it."""
    if (Bp // tm) * (Pp // tn) > 1 or weight_bytes < (2 << 20):
        return tm, tn
    if tn % 256 == 0:
        return tm, tn // 2
    if tm % (2 * sub) == 0:
        return tm // 2, tn
    return tm, tn


# ---------------------------------------------------------------------------
# One-time weight prep (do at model init, NOT per forward)
# ---------------------------------------------------------------------------
def prepare_classifier_weight(weight, *, compute_dtype=None):
    """(P, D) torch-layout weight -> padded (Dp, Pp) MXU-canonical layout.

    Returns (w_dp, pid_num, in_dim).  The optional cast (e.g. to bf16 on
    v6e/v7x) is done here so the weight is stored persistently in the compute
    dtype instead of being re-cast (extra HBM passes) every forward.
    """
    P, D = weight.shape
    w = weight if compute_dtype is None else weight.astype(compute_dtype)
    w = w.T  # (D, P): contraction dim leading -> canonical (tk, tn) MXU RHS
    w = _pad_axis(w, 0, _LANE)
    w = _pad_axis(w, 1, _LANE if P <= 512 else 512)
    return w, P, D


# ---------------------------------------------------------------------------
# Forward
# ---------------------------------------------------------------------------
@functools.partial(jax.jit, static_argnums=(2, 3))
def _fwd_impl(x, w_dp, pid_num, in_dim):
    out_dtype = x.dtype

    # torch x.squeeze(): collapse trailing 1x1 spatial dims but keep batch.
    if x.ndim > 2:
        x2 = x.reshape(x.shape[0], -1)
    elif x.ndim == 2:
        x2 = x
    else:
        x2 = x[None, :]

    B, D = x2.shape
    assert D == in_dim, f"feature dim mismatch: x has {D}, weight has {in_dim}"

    Dp, Pp = w_dp.shape
    cdtype = w_dp.dtype
    if x2.dtype != cdtype:
        x2 = x2.astype(cdtype)  # activations are tiny vs. the weight stream

    itemsize = jnp.dtype(cdtype).itemsize
    sub = _sublane_multiple(cdtype)

    tm, tn, tk, collapsed = _select_tiles(B, Dp, Pp, itemsize, sub)
    if collapsed:
        tm, tn = _maybe_split_for_megacore(
            tm, tn, _round_up(B, sub), Pp, Dp * Pp * itemsize, sub
        )
        tk = Dp

    # Pad the (small) activation per call: B to a multiple of tm, D to Dp
    # (already 128-aligned), so every block is full -> unmasked vreg traffic.
    x_p = _pad_axis(_pad_axis(x2, 0, tm), 1, Dp)
    Bp = x_p.shape[0]

    footprint = 2 * (tm * tk + tk * tn + tm * tn) * itemsize
    if not collapsed:
        footprint += tm * tn * 4
    vmem_limit = min(_VMEM_LIMIT_CAP, max(footprint + (2 << 20), 16 << 20))

    cost = pl.CostEstimate(
        flops=2 * Bp * Dp * Pp,
        transcendentals=0,
        bytes_accessed=itemsize * (Bp * Dp + Dp * Pp)
        + jnp.dtype(out_dtype).itemsize * Bp * Pp,
    )

    if collapsed:
        out_p = pl.pallas_call(
            _linear_kernel,
            out_shape=jax.ShapeDtypeStruct((Bp, Pp), out_dtype),
            grid=(Bp // tm, Pp // tn),
            in_specs=[
                pl.BlockSpec((tm, Dp), lambda i, j: (i, 0)),  # activations
                pl.BlockSpec((Dp, tn), lambda i, j: (0, j)),  # weight (D, P)
            ],
            out_specs=pl.BlockSpec((tm, tn), lambda i, j: (i, j)),
            compiler_params=pltpu.CompilerParams(
                dimension_semantics=("parallel", "parallel"),
                vmem_limit_bytes=vmem_limit,
            ),
            cost_estimate=cost,
        )(x_p, w_dp)
    else:
        out_p = pl.pallas_call(
            _linear_acc_kernel,
            out_shape=jax.ShapeDtypeStruct((Bp, Pp), out_dtype),
            grid=(Bp // tm, Pp // tn, Dp // tk),
            in_specs=[
                pl.BlockSpec((tm, tk), lambda i, j, k: (i, k)),
                pl.BlockSpec((tk, tn), lambda i, j, k: (k, j)),
            ],
            out_specs=pl.BlockSpec((tm, tn), lambda i, j, k: (i, j)),
            scratch_shapes=[pltpu.VMEM((tm, tn), jnp.float32)],
            compiler_params=pltpu.CompilerParams(
                dimension_semantics=("parallel", "parallel", "arbitrary"),
                vmem_limit_bytes=vmem_limit,
            ),
            cost_estimate=cost,
        )(x_p, w_dp)

    return out_p[:B, :pid_num]


def identity_classifier_fwd(x, prepared_weight):
    """Forward with a pre-prepared weight (the optimized, production path)."""
    w_dp, pid_num, in_dim = prepared_weight
    return _fwd_impl(x, w_dp, pid_num, in_dim)


def identity_classifier(x, weight, *, compute_dtype=None):
    """Convenience one-shot path (weight in torch (P, D) layout).

    # TODO(synk): in real use, call prepare_classifier_weight() once at model
    # init and use identity_classifier_fwd() to avoid per-call weight traffic.
    """
    return identity_classifier_fwd(
        x, prepare_classifier_weight(weight, compute_dtype=compute_dtype)
    )


# ---------------------------------------------------------------------------
# Demo / correctness check
# ---------------------------------------------------------------------------
if __name__ == "__main__":
    key = jax.random.PRNGKey(0)
    k_x, k_w = jax.random.split(key)

    # Small shapes consistent with the module: pooled feature (B, in_dim, 1, 1).
    B, in_dim = 2, 32
    source_pid_num = 8  # pid_num == source_pid_num (Linear out dim, no bias)

    x = jax.random.normal(k_x, (B, in_dim, 1, 1), dtype=jnp.float32)
    # weights_init_classifier: normal std=0.001, no bias.
    weight = 0.001 * jax.random.normal(
        k_w, (source_pid_num, in_dim), dtype=jnp.float32
    )

    ref = x.reshape(B, in_dim) @ weight.T

    # f32 path (exact) — weight prepared once, reused across forwards.
    prep_f32 = prepare_classifier_weight(weight)
    out = jax.block_until_ready(identity_classifier_fwd(x, prep_f32))
    assert out.shape == (B, source_pid_num)
    assert jnp.allclose(out, ref, atol=1e-5, rtol=1e-5)

    # Persistently-bf16 weight path (f32 accumulate) as used on v6e / v7x.
    prep_bf16 = prepare_classifier_weight(weight, compute_dtype=jnp.bfloat16)
    out_bf16 = jax.block_until_ready(identity_classifier_fwd(x, prep_bf16))
    assert out_bf16.shape == (B, source_pid_num)
    assert jnp.allclose(out_bf16, ref, atol=1e-4, rtol=2e-2)

    print("KERNEL_OK")
</pallas_src>

<mosaic_0001>
module attributes {stable_mosaic.version = 11 : i64} {
  func.func @_linear_kernel(%arg0: i32, %arg1: i32, %arg2: memref<8x128xf32, #tpu.memory_space<vmem>>, %arg3: memref<128x128xf32, #tpu.memory_space<vmem>>, %arg4: memref<8x128xf32, #tpu.memory_space<vmem>>) attributes {dimension_semantics = [#tpu.dimension_semantics<parallel>, #tpu.dimension_semantics<parallel>], iteration_bounds = array<i64: 1, 1>, scalar_prefetch = 0 : i64, scratch_operands = 0 : i64, tpu.core_type = #tpu.core_type<tc>, window_params = [{transform_indices = @transform_0, window_bounds = array<i64: 8, 128>}, {transform_indices = @transform_1, window_bounds = array<i64: 128, 128>}, {transform_indices = @transform_2, window_bounds = array<i64: 8, 128>}]} {
    %c0 = arith.constant 0 : index
    %c0_0 = arith.constant 0 : index
    %0 = vector.load %arg2[%c0, %c0_0] : memref<8x128xf32, #tpu.memory_space<vmem>>, vector<8x128xf32>
    %c0_1 = arith.constant 0 : index
    %c0_2 = arith.constant 0 : index
    %1 = vector.load %arg3[%c0_1, %c0_2] : memref<128x128xf32, #tpu.memory_space<vmem>>, vector<128x128xf32>
    %cst = arith.constant dense<0.000000e+00> : vector<8x128xf32>
    %2 = tpu.matmul %0, %1, %cst {dimension_numbers = #tpu.dot_dimension_numbers<[1], [0], [0], [1], [0, 0, 1, 1], [], []>} : vector<8x128xf32>, vector<128x128xf32>, vector<8x128xf32> -> vector<8x128xf32>
    %c0_3 = arith.constant 0 : index
    %c0_4 = arith.constant 0 : index
    %3 = vector.load %arg4[%c0_3, %c0_4] : memref<8x128xf32, #tpu.memory_space<vmem>>, vector<8x128xf32>
    tpu.vector_store %arg4[%c0_3, %c0_4], %2 {strides = array<i32>} : memref<8x128xf32, #tpu.memory_space<vmem>>, vector<8x128xf32>,
    return
  }
  func.func @transform_0(%arg0: i32, %arg1: i32) -> (i32, i32) {
    %c0_i32 = arith.constant 0 : i32
    %c0_i32_0 = arith.constant 0 : i32
    return %arg0, %c0_i32 : i32, i32
  }
  func.func @transform_1(%arg0: i32, %arg1: i32) -> (i32, i32) {
    %c0_i32 = arith.constant 0 : i32
    %c0_i32_0 = arith.constant 0 : i32
    return %c0_i32, %arg1 : i32, i32
  }
  func.func @transform_2(%arg0: i32, %arg1: i32) -> (i32, i32) {
    %c0_i32 = arith.constant 0 : i32
    return %arg0, %arg1 : i32, i32
  }
}

</mosaic_0001>

<llo_original>
// kernel: _fwd_impl.1
$region0: #{_fwd_impl.1}
  #allocation0 [shape = 'u32[]', space=smem, size = 0x4, offset = 0x4, fixed_abs, tag = 'smem constant byte address 0x4 - core index']
  #allocation1 [shape = 'u32[144,128]{1,0:T(1,128)}', space=vmem, size = 0x12000, scoped, tag = 'internal scratch']
  %s0 = inlined_call_operand.vmem [shape: f32[8,128], index: 0, kind: input, shape index: {}]
  %s1 = inlined_call_operand.hbm [shape: f32[128,128], index: 1, kind: input, shape index: {}]
  %s2 = inlined_call_operand.vmem [shape: f32[8,128], index: 2, kind: output, shape index: {}]
  %s3 = sld [smem:[#allocation0]]
  $region22: #{_fwd_impl.1} parent=0
    _
  %s5 = ssub.s32 1, %s3
  %s6 = scalar_select 0, %s5, %s3
  $region1: #{_fwd_impl.1} parent=0
    #allocation2 [shape = 'u8[65536]{0}', space=vmem, size = 0x10000, scoped, tag = 'input window, operand 1, single buffered']
    #allocation3 [shape = 's32[1]{0}', space=sflag, size = 0x4, scoped, tag = 'scoped memory for _fwd_impl.1']
    %7 = vsyncpa [#allocation3], 0
    // Predicated region
    $region2: #{_fwd_impl.1} parent=1 // pred_check
      _
    $region3: #{_fwd_impl.1} parent=1 // pred_check_branch
      %9 = sbr.rel (0) target = $region5
    $region4: #{_fwd_impl.1} parent=1 // pred_region
      _
    $region5: #{_fwd_impl.1} parent=1 // pred_fallthru
      _
    // Predicated region
    $region6: #{_fwd_impl.1} parent=1 // pred_check
      _
    $region7: #{_fwd_impl.1} parent=1 // pred_check_branch
      %11 = sbr.rel (0) target = $region9
    $region8: #{_fwd_impl.1} parent=1 // pred_region
      %s13 = ssub.s32 2048, 2048
      %14 = vsyncadd [#allocation3], %s13
      %s15 = sshll.u32 [#allocation2], 4
      %s16 = int_to_ptr.vmem [resolvable:$true] %s15
      %21 = dma.hbm_to_vmem [thread:$0]  %s1, 2048, %s16, [#allocation3], 128, 128, 8
    $region9: #{_fwd_impl.1} parent=1 // pred_fallthru
      _
    // Predicated region
    $region10: #{_fwd_impl.1} parent=1 // pred_check
      _
    $region11: #{_fwd_impl.1} parent=1 // pred_check_branch
      %23 = sbr.rel (0) target = $region13
    $region12: #{_fwd_impl.1} parent=1 // pred_region
      %24 = dma.done [#allocation3], 2048
    $region13: #{_fwd_impl.1} parent=1 // pred_fallthru
      _
    %v25 = vld [vmem:[%s0] sm:$0xff]
    %v26 = vld [vmem:[#allocation2] sm:$0xff]
    %v27 = vld [vmem:[#allocation2 + $0x8] sm:$0xff]
    %v28 = vld [vmem:[#allocation2 + $0x10] sm:$0xff]
    %v29 = vld [vmem:[#allocation2 + $0x18] sm:$0xff]
    %v30 = vld [vmem:[#allocation2 + $0x20] sm:$0xff]
    %v31 = vld [vmem:[#allocation2 + $0x28] sm:$0xff]
    %v32 = vld [vmem:[#allocation2 + $0x30] sm:$0xff]
    %v33 = vld [vmem:[#allocation2 + $0x38] sm:$0xff]
    %v34 = vld [vmem:[#allocation2 + $0x40] sm:$0xff]
    %v35 = vld [vmem:[#allocation2 + $0x48] sm:$0xff]
    %v36 = vld [vmem:[#allocation2 + $0x50] sm:$0xff]
    %v37 = vld [vmem:[#allocation2 + $0x58] sm:$0xff]
    %v38 = vld [vmem:[#allocation2 + $0x60] sm:$0xff]
    %v39 = vld [vmem:[#allocation2 + $0x68] sm:$0xff]
    %v40 = vld [vmem:[#allocation2 + $0x70] sm:$0xff]
    %v41 = vld [vmem:[#allocation2 + $0x78] sm:$0xff]
    %42 = vmatprep.subr.mxu0 0.0
    %43 = vmatpush1.msra.mxu0 %v26
    %44 = vmatprep.subr.mxu0 0.0
    %45 = vmatpush1.msra.mxu0 %v27
    %46 = vmatprep.subr.mxu0 0.0
    %47 = vmatpush1.msra.mxu0 %v28
    %48 = vmatprep.subr.mxu0 0.0
    %49 = vmatpush1.msra.mxu0 %v29
    %50 = vmatprep.subr.mxu0 0.0
    %51 = vmatpush1.msra.mxu0 %v30
    %52 = vmatprep.subr.mxu0 0.0
    %53 = vmatpush1.msra.mxu0 %v31
    %54 = vmatprep.subr.mxu0 0.0
    %55 = vmatpush1.msra.mxu0 %v32
    %56 = vmatprep.subr.mxu0 0.0
    %57 = vmatpush1.msra.mxu0 %v33
    %58 = vmatprep.subr.mxu0 0.0
    %59 = vmatpush1.msra.mxu0 %v34
    %60 = vmatprep.subr.mxu0 0.0
    %61 = vmatpush1.msra.mxu0 %v35
    %62 = vmatprep.subr.mxu0 0.0
    %63 = vmatpush1.msra.mxu0 %v36
    %64 = vmatprep.subr.mxu0 0.0
    %65 = vmatpush1.msra.mxu0 %v37
    %66 = vmatprep.subr.mxu0 0.0
    %67 = vmatpush1.msra.mxu0 %v38
    %68 = vmatprep.subr.mxu0 0.0
    %69 = vmatpush1.msra.mxu0 %v39
    %70 = vmatprep.subr.mxu0 0.0
    %71 = vmatpush1.msra.mxu0 %v40
    %72 = vmatprep.subr.mxu0 0.0
    %73 = vmatpush1.msra.mxu0 %v41
    %74 = vmatprep.subr.mxu0 0.0
    %75 = vmatpush1.msra.mxu0 0.0
    %76 = vmatprep.subr.mxu0 0.0
    %77 = vmatpush1.msra.mxu0 0.0
    %78 = vmatprep.subr.mxu0 0.0
    %79 = vmatpush1.msra.mxu0 0.0
    %80 = vmatprep.subr.mxu0 0.0
    %81 = vmatpush1.msra.mxu0 0.0
    %82 = vmatprep.subr.mxu0 0.0
    %83 = vmatpush1.msra.mxu0 0.0
    %84 = vmatprep.subr.mxu0 0.0
    %85 = vmatpush1.msra.mxu0 0.0
    %86 = vmatprep.subr.mxu0 0.0
    %87 = vmatpush1.msra.mxu0 0.0
    %88 = vmatprep.subr.mxu0 0.0
    %89 = vmatpush1.msra.mxu0 0.0
    %90 = vmatprep.subr.mxu0 0.0
    %91 = vmatpush1.msra.mxu0 0.0
    %92 = vmatprep.subr.mxu0 0.0
    %93 = vmatpush1.msra.mxu0 0.0
    %94 = vmatprep.subr.mxu0 0.0
    %95 = vmatpush1.msra.mxu0 0.0
    %96 = vmatprep.subr.mxu0 0.0
    %97 = vmatpush1.msra.mxu0 0.0
    %98 = vmatprep.subr.mxu0 0.0
    %99 = vmatpush1.msra.mxu0 0.0
    %100 = vmatprep.subr.mxu0 0.0
    %101 = vmatpush1.msra.mxu0 0.0
    %102 = vmatprep.subr.mxu0 0.0
    %103 = vmatpush1.msra.mxu0 0.0
    %104 = vmatprep.subr.mxu0 0.0
    %105 = vmatpush1.msra.mxu0 0.0
    %106 = vmatprep.mubr.f32.mxu0 0.0
    %107 = vmatmul.mubr.f32.gmra.mrb[0].mxu0 %v25
    %v108 = vpop.f32.mrb[0].mxu0
    %v109 = vadd.f32 0.0, %v108
    %v110 = vpop.f32.mrb[0].mxu0
    %111 = vdwg.mxu0
    %112 = vst [vmem:[%s2] sm:$0xff] %v109
    // Predicated region
    $region14: #{_fwd_impl.1} parent=1 // pred_check
      _
    $region15: #{_fwd_impl.1} parent=1 // pred_check_branch
      %114 = sbr.rel (0) target = $region17
    $region16: #{_fwd_impl.1} parent=1 // pred_region
      _
    $region17: #{_fwd_impl.1} parent=1 // pred_fallthru
      _
    // Predicated region
    $region18: #{_fwd_impl.1} parent=1 // pred_check
      _
    $region19: #{_fwd_impl.1} parent=1 // pred_check_branch
      %116 = sbr.rel (0) target = $region21
    $region20: #{_fwd_impl.1} parent=1 // pred_region
      _
    $region21: #{_fwd_impl.1} parent=1 // pred_fallthru
      _
    %117 = vsyncpa [#allocation3], 1

</llo_original>
